<compile_context>
chip_gen: v6e
topology: v6e:2x2x1
jax: 0.10.0
libtpu: 0.0.40
codegen_flags: <defaults>
</compile_context>

<pallas_src>
import jax
import jax.numpy as jnp
from jax.experimental import pallas as pl
from jax.experimental.pallas import tpu as pltpu


def simple_nn_kernel(x_ref, w1_ref, b1_ref, w2_ref, b2_ref, o_ref):
    # x: [TB, 400] VMEM; w1: [400, 2] VMEM (pre-transposed, resident)
    # b1: [2] SMEM; w2: [4] SMEM (row-major flatten of w2^T); b2: [2] SMEM
    x = x_ref[...]
    w1 = w1_ref[...]
    if w1.dtype != x.dtype:
        # Optional reduced-precision MXU operands (f32 accumulation is kept).
        x = x.astype(w1.dtype)
    # fc1 on the MXU with f32 accumulation.
    acc = jnp.dot(x, w1, preferred_element_type=jnp.float32)       # [TB, 2]
    # bias + ReLU on the VPU, per output column (b1 scalars from SMEM).
    h0 = jnp.maximum(acc[:, 0:1] + b1_ref[0], 0.0)                 # [TB, 1]
    h1 = jnp.maximum(acc[:, 1:2] + b1_ref[1], 0.0)                 # [TB, 1]
    # fc2 ([TB,2] x [2,2]) is far too small for the MXU — do it as pure VPU
    # scalar-broadcast multiply-adds (free filler under the DMA-bound regime).
    out0 = h0 * w2_ref[0] + h1 * w2_ref[2] + b2_ref[0]
    out1 = h0 * w2_ref[1] + h1 * w2_ref[3] + b2_ref[1]
    o_ref[:, 0:1] = out0.astype(o_ref.dtype)
    o_ref[:, 1:2] = out1.astype(o_ref.dtype)


def _round_up(n, m):
    return ((n + m - 1) // m) * m


def prepare_params(w1, b1, w2, b2, *, mxu_dtype=jnp.float32):
    """One-time preprocessing of PyTorch-layout params (hoisted off the hot path).

    w1: [2, 400], b1: [2], w2: [2, 2], b2: [2]
    Returns (w1^T [400,2] in mxu_dtype, b1 [2] f32, flat(w2^T) [4] f32, b2 [2] f32).
    Pass mxu_dtype=jnp.bfloat16 to run the fc1 matmul with bf16 operands
    (f32 accumulation kept in-kernel) — mainly a v7x lever; accuracy-dependent.
    """
    return (
        jnp.transpose(w1).astype(mxu_dtype),                # [400, 2]
        b1.astype(jnp.float32),                              # [2]  SMEM scalars
        jnp.transpose(w2).reshape(-1).astype(jnp.float32),   # [4]  w2^T row-major
        b2.astype(jnp.float32),                              # [2]  SMEM scalars
    )


def simple_nn_forward(x, w1_t, b1_s, w2_s, b2_s, *, tb=8192,
                      vmem_limit_bytes=60 * 1024 * 1024):
    """x: [B, 400]; params already preprocessed by prepare_params. Returns [B, 2]."""
    B, D = x.shape
    N = 2

    # Batch tile: multiple of 8 (sublane constraint), capped at tb rows.
    # No padding copy of x: ragged last tile handled by Pallas masking.
    TB = min(tb, _round_up(B, 8))
    grid = (pl.cdiv(B, TB),)

    smem_spec = pl.BlockSpec(memory_space=pltpu.MemorySpace.SMEM)

    # Advisory cost estimate (bytes ~= x read + out write + params).
    bytes_accessed = (B * D + B * N) * x.dtype.itemsize \
        + D * N * w1_t.dtype.itemsize + 8 * 4
    cost = pl.CostEstimate(
        flops=2 * B * D * N + 2 * B * N * N,
        transcendentals=0,
        bytes_accessed=bytes_accessed,
    )

    return pl.pallas_call(
        simple_nn_kernel,
        out_shape=jax.ShapeDtypeStruct((B, N), x.dtype),
        grid=grid,
        in_specs=[
            # x streams through VMEM one (TB, 400) tile per step (double-buffered).
            pl.BlockSpec((TB, D), lambda i: (i, 0)),
            # w1: constant index_map -> DMA'd once, resident across all steps.
            pl.BlockSpec((D, N), lambda i: (0, 0)),
            # Tiny params as SMEM scalars (no lane-padded VMEM tiles).
            smem_spec,  # b1 [2]
            smem_spec,  # w2 [4]
            smem_spec,  # b2 [2]
        ],
        out_specs=pl.BlockSpec((TB, N), lambda i: (i, 0)),
        compiler_params=pltpu.CompilerParams(
            # Megacore: v7x shards grid steps across its two TensorCores.
            dimension_semantics=("parallel",),
            # Explicit scoped-VMEM budget (v5e default is 16 MiB; TB=8192 needs
            # ~41 MiB; stays under v7x's 64 MiB per-TC physical VMEM).
            vmem_limit_bytes=vmem_limit_bytes,
        ),
        cost_estimate=cost,
    )(x, w1_t, b1_s, w2_s, b2_s)


def init_params(key):
    """Deterministic init mimicking PyTorch nn.Linear defaults (uniform +/- 1/sqrt(fan_in))."""
    k1, k2, k3, k4 = jax.random.split(key, 4)
    bound1 = 1.0 / jnp.sqrt(400.0)
    bound2 = 1.0 / jnp.sqrt(2.0)
    w1 = jax.random.uniform(k1, (2, 400), jnp.float32, -bound1, bound1)
    b1 = jax.random.uniform(k2, (2,), jnp.float32, -bound1, bound1)
    w2 = jax.random.uniform(k3, (2, 2), jnp.float32, -bound2, bound2)
    b2 = jax.random.uniform(k4, (2,), jnp.float32, -bound2, bound2)
    return w1, b1, w2, b2


def _reference(x, w1, b1, w2, b2):
    return jnp.maximum(x @ w1.T + b1, 0.0) @ w2.T + b2


if __name__ == "__main__":
    key = jax.random.PRNGKey(0)
    k_x1, k_x2, k_p = jax.random.split(key, 3)

    w1, b1, w2, b2 = init_params(k_p)
    # Hoisted, one-time parameter preprocessing (not part of the per-call path).
    params = prepare_params(w1, b1, w2, b2)

    # 1) Small single-tile case (B=8).
    x_small = jax.random.normal(k_x1, (8, 400), jnp.float32)
    out_small = jax.block_until_ready(simple_nn_forward(x_small, *params))
    ref_small = _reference(x_small, w1, b1, w2, b2)
    assert out_small.shape == (8, 2)
    assert jnp.allclose(out_small, ref_small, atol=1e-5, rtol=1e-5)

    # 2) Multi-tile case with a ragged last tile (B not a multiple of TB or 8):
    #    exercises the pipelined grid and the masked out-of-bounds rows.
    x_big = jax.random.normal(k_x2, (1234, 400), jnp.float32)
    out_big = jax.block_until_ready(simple_nn_forward(x_big, *params, tb=512))
    ref_big = _reference(x_big, w1, b1, w2, b2)
    assert out_big.shape == (1234, 2)
    assert jnp.allclose(out_big, ref_big, atol=1e-5, rtol=1e-5)

    print("KERNEL_OK")
</pallas_src>

<mosaic_0001>
module attributes {stable_mosaic.version = 11 : i64} {
  func.func @simple_nn_kernel(%arg0: i32, %arg1: memref<8x400xf32, #tpu.memory_space<vmem>>, %arg2: memref<400x2xf32, #tpu.memory_space<vmem>>, %arg3: memref<2xf32, #tpu.memory_space<smem>>, %arg4: memref<4xf32, #tpu.memory_space<smem>>, %arg5: memref<2xf32, #tpu.memory_space<smem>>, %arg6: memref<8x2xf32, #tpu.memory_space<vmem>>) attributes {dimension_semantics = [#tpu.dimension_semantics<parallel>], iteration_bounds = array<i64: 1>, scalar_prefetch = 0 : i64, scratch_operands = 0 : i64, tpu.core_type = #tpu.core_type<tc>, window_params = [{transform_indices = @transform_0, window_bounds = array<i64: 8, 400>}, {pipeline_mode = #tpu.pipeline_mode<synchronous>, transform_indices = @transform_1, window_bounds = array<i64: 400, 2>}, {transform_indices = @transform_2, window_bounds = array<i64: 2>}, {transform_indices = @transform_3, window_bounds = array<i64: 4>}, {transform_indices = @transform_4, window_bounds = array<i64: 2>}, {transform_indices = @transform_5, window_bounds = array<i64: 8, 2>}]} {
    %c0 = arith.constant 0 : index
    %c0_0 = arith.constant 0 : index
    %0 = vector.load %arg1[%c0, %c0_0] : memref<8x400xf32, #tpu.memory_space<vmem>>, vector<8x400xf32>
    %c0_1 = arith.constant 0 : index
    %c0_2 = arith.constant 0 : index
    %1 = vector.load %arg2[%c0_1, %c0_2] : memref<400x2xf32, #tpu.memory_space<vmem>>, vector<400x2xf32>
    %cst = arith.constant dense<0.000000e+00> : vector<8x2xf32>
    %2 = tpu.matmul %0, %1, %cst {dimension_numbers = #tpu.dot_dimension_numbers<[1], [0], [0], [1], [0, 0, 1, 1], [], []>} : vector<8x400xf32>, vector<400x2xf32>, vector<8x2xf32> -> vector<8x2xf32>
    %3 = vector.extract_strided_slice %2 {offsets = [0, 0], sizes = [8, 1], strides = [1, 1]} : vector<8x2xf32> to vector<8x1xf32>
    %c0_3 = arith.constant 0 : index
    %4 = memref.load %arg3[%c0_3] : memref<2xf32, #tpu.memory_space<smem>>
    %5 = vector.broadcast %4 : f32 to vector<8x1xf32>
    %6 = arith.addf %3, %5 : vector<8x1xf32>
    %cst_4 = arith.constant 0.000000e+00 : f32
    %7 = vector.broadcast %cst_4 : f32 to vector<8x1xf32>
    %8 = arith.maximumf %6, %7 : vector<8x1xf32>
    %9 = vector.extract_strided_slice %2 {offsets = [0, 1], sizes = [8, 1], strides = [1, 1]} : vector<8x2xf32> to vector<8x1xf32>
    %c1 = arith.constant 1 : index
    %10 = memref.load %arg3[%c1] : memref<2xf32, #tpu.memory_space<smem>>
    %11 = vector.broadcast %10 : f32 to vector<8x1xf32>
    %12 = arith.addf %9, %11 : vector<8x1xf32>
    %cst_5 = arith.constant 0.000000e+00 : f32
    %13 = vector.broadcast %cst_5 : f32 to vector<8x1xf32>
    %14 = arith.maximumf %12, %13 : vector<8x1xf32>
    %c0_6 = arith.constant 0 : index
    %15 = memref.load %arg4[%c0_6] : memref<4xf32, #tpu.memory_space<smem>>
    %16 = vector.broadcast %15 : f32 to vector<8x1xf32>
    %17 = arith.mulf %8, %16 : vector<8x1xf32>
    %c2 = arith.constant 2 : index
    %18 = memref.load %arg4[%c2] : memref<4xf32, #tpu.memory_space<smem>>
    %19 = vector.broadcast %18 : f32 to vector<8x1xf32>
    %20 = arith.mulf %14, %19 : vector<8x1xf32>
    %21 = arith.addf %17, %20 : vector<8x1xf32>
    %c0_7 = arith.constant 0 : index
    %22 = memref.load %arg5[%c0_7] : memref<2xf32, #tpu.memory_space<smem>>
    %23 = vector.broadcast %22 : f32 to vector<8x1xf32>
    %24 = arith.addf %21, %23 : vector<8x1xf32>
    %c1_8 = arith.constant 1 : index
    %25 = memref.load %arg4[%c1_8] : memref<4xf32, #tpu.memory_space<smem>>
    %26 = vector.broadcast %25 : f32 to vector<8x1xf32>
    %27 = arith.mulf %8, %26 : vector<8x1xf32>
    %c3 = arith.constant 3 : index
    %28 = memref.load %arg4[%c3] : memref<4xf32, #tpu.memory_space<smem>>
    %29 = vector.broadcast %28 : f32 to vector<8x1xf32>
    %30 = arith.mulf %14, %29 : vector<8x1xf32>
    %31 = arith.addf %27, %30 : vector<8x1xf32>
    %c1_9 = arith.constant 1 : index
    %32 = memref.load %arg5[%c1_9] : memref<2xf32, #tpu.memory_space<smem>>
    %33 = vector.broadcast %32 : f32 to vector<8x1xf32>
    %34 = arith.addf %31, %33 : vector<8x1xf32>
    %c0_10 = arith.constant 0 : index
    %c0_11 = arith.constant 0 : index
    %35 = vector.load %arg6[%c0_10, %c0_11] : memref<8x2xf32, #tpu.memory_space<vmem>>, vector<8x1xf32>
    tpu.vector_store %arg6[%c0_10, %c0_11], %24 {strides = array<i32>} : memref<8x2xf32, #tpu.memory_space<vmem>>, vector<8x1xf32>,
    %c0_12 = arith.constant 0 : index
    %c1_13 = arith.constant 1 : index
    %36 = vector.load %arg6[%c0_12, %c1_13] : memref<8x2xf32, #tpu.memory_space<vmem>>, vector<8x1xf32>
    tpu.vector_store %arg6[%c0_12, %c1_13], %34 {strides = array<i32>} : memref<8x2xf32, #tpu.memory_space<vmem>>, vector<8x1xf32>,
    return
  }
  func.func @transform_0(%arg0: i32) -> (i32, i32) {
    %c0_i32 = arith.constant 0 : i32
    %c0_i32_0 = arith.constant 0 : i32
    return %arg0, %c0_i32 : i32, i32
  }
  func.func @transform_1(%arg0: i32) -> (i32, i32) {
    %c0_i32 = arith.constant 0 : i32
    %c0_i32_0 = arith.constant 0 : i32
    %c0_i32_1 = arith.constant 0 : i32
    return %c0_i32, %c0_i32_0 : i32, i32
  }
  func.func @transform_2(%arg0: i32) -> i32 {
    %c0_i32 = arith.constant 0 : i32
    %c0_i32_0 = arith.constant 0 : i32
    return %c0_i32 : i32
  }
  func.func @transform_3(%arg0: i32) -> i32 {
    %c0_i32 = arith.constant 0 : i32
    %c0_i32_0 = arith.constant 0 : i32
    return %c0_i32 : i32
  }
  func.func @transform_4(%arg0: i32) -> i32 {
    %c0_i32 = arith.constant 0 : i32
    %c0_i32_0 = arith.constant 0 : i32
    return %c0_i32 : i32
  }
  func.func @transform_5(%arg0: i32) -> (i32, i32) {
    %c0_i32 = arith.constant 0 : i32
    %c0_i32_0 = arith.constant 0 : i32
    return %arg0, %c0_i32 : i32, i32
  }
}

</mosaic_0001>

<llo_original>
// kernel: tpu_custom_call.1
$region0: #{tpu_custom_call.1}
  #allocation0 [shape = 'u32[]', space=smem, size = 0x4, offset = 0x4, fixed_abs, tag = 'smem constant byte address 0x4 - core index']
  #allocation1 [shape = 'u32[144,128]{1,0:T(1,128)}', space=vmem, size = 0x12000, scoped, tag = 'internal scratch']
  %s0 = inlined_call_operand.vmem [shape: f32[8,400], index: 0, kind: input, shape index: {}]
  %s1 = inlined_call_operand.vmem [shape: f32[400,2], index: 1, kind: input, shape index: {}]
  %s2 = inlined_call_operand.vmem [shape: f32[2], index: 2, kind: input, shape index: {}]
  %s3 = inlined_call_operand.vmem [shape: f32[4], index: 3, kind: input, shape index: {}]
  %s4 = inlined_call_operand.vmem [shape: f32[2], index: 4, kind: input, shape index: {}]
  %s5 = inlined_call_operand.vmem [shape: f32[8,2], index: 5, kind: output, shape index: {}]
  %s6 = sld [smem:[#allocation0]]
  $region42: #{tpu_custom_call.1} parent=0
    _
  %s8 = ssub.s32 1, %s6
  %s9 = scalar_select 0, %s8, %s6
  $region1: #{tpu_custom_call.1} parent=0
    #allocation2 [shape = 'u8[512]{0}', space=smem, size = 0x200, scoped, tag = 'input window, operand 2, single buffered']
    #allocation3 [shape = 's32[1]{0}', space=sflag, size = 0x4, scoped, tag = 'scoped memory for tpu_custom_call.1']
    #allocation4 [shape = 'u8[512]{0}', space=smem, size = 0x200, scoped, tag = 'input window, operand 3, single buffered']
    #allocation5 [shape = 's32[1]{0}', space=sflag, size = 0x4, scoped, tag = 'scoped memory for tpu_custom_call.1']
    #allocation6 [shape = 'u8[512]{0}', space=smem, size = 0x200, scoped, tag = 'input window, operand 4, single buffered']
    %10 = vsyncpa [#allocation3], 0
    %11 = vsyncpa [#allocation5], 0
    // Predicated region
    $region2: #{tpu_custom_call.1} parent=1 // pred_check
      _
    $region3: #{tpu_custom_call.1} parent=1 // pred_check_branch
      %13 = sbr.rel (0) target = $region5
    $region4: #{tpu_custom_call.1} parent=1 // pred_region
      _
    $region5: #{tpu_custom_call.1} parent=1 // pred_fallthru
      _
    // Predicated region
    $region6: #{tpu_custom_call.1} parent=1 // pred_check
      _
    $region7: #{tpu_custom_call.1} parent=1 // pred_check_branch
      %15 = sbr.rel (0) target = $region9
    $region8: #{tpu_custom_call.1} parent=1 // pred_region
      _
    $region9: #{tpu_custom_call.1} parent=1 // pred_fallthru
      _
    // Predicated region
    $region10: #{tpu_custom_call.1} parent=1 // pred_check
      _
    $region11: #{tpu_custom_call.1} parent=1 // pred_check_branch
      %17 = sbr.rel (0) target = $region13
    $region12: #{tpu_custom_call.1} parent=1 // pred_region
      %s19 = ssub.s32 16, 16
      %20 = vsyncadd [#allocation3], %s19
      %s22 = sshll.u32 %s2, 4
      %s23 = int_to_ptr.vmem [resolvable:$true] %s22
      %25 = dma.vmem_to_smem %s23, 16, [#allocation2], [#allocation3]
    $region13: #{tpu_custom_call.1} parent=1 // pred_fallthru
      _
    // Predicated region
    $region14: #{tpu_custom_call.1} parent=1 // pred_check
      _
    $region15: #{tpu_custom_call.1} parent=1 // pred_check_branch
      %27 = sbr.rel (0) target = $region17
    $region16: #{tpu_custom_call.1} parent=1 // pred_region
      %s29 = ssub.s32 16, 16
      %30 = vsyncadd [#allocation5], %s29
      %s32 = sshll.u32 %s3, 4
      %s33 = int_to_ptr.vmem [resolvable:$true] %s32
      %35 = dma.vmem_to_smem %s33, 16, [#allocation4], [#allocation5]
    $region17: #{tpu_custom_call.1} parent=1 // pred_fallthru
      _
    // Predicated region
    $region18: #{tpu_custom_call.1} parent=1 // pred_check
      _
    $region19: #{tpu_custom_call.1} parent=1 // pred_check_branch
      %37 = sbr.rel (0) target = $region21
    $region20: #{tpu_custom_call.1} parent=1 // pred_region
      %s39 = ssub.s32 16, 16
      %40 = vsyncadd [#allocation5], %s39
      %s42 = sshll.u32 %s4, 4
      %s43 = int_to_ptr.vmem [resolvable:$true] %s42
      %45 = dma.vmem_to_smem %s43, 16, [#allocation6], [#allocation5]
    $region21: #{tpu_custom_call.1} parent=1 // pred_fallthru
      _
    // Predicated region
    $region22: #{tpu_custom_call.1} parent=1 // pred_check
      _
    $region23: #{tpu_custom_call.1} parent=1 // pred_check_branch
      %47 = sbr.rel (0) target = $region25
    $region24: #{tpu_custom_call.1} parent=1 // pred_region
      %48 = dma.done [#allocation3], 16
    $region25: #{tpu_custom_call.1} parent=1 // pred_fallthru
      _
    // Predicated region
    $region26: #{tpu_custom_call.1} parent=1 // pred_check
      _
    $region27: #{tpu_custom_call.1} parent=1 // pred_check_branch
      %50 = sbr.rel (0) target = $region29
    $region28: #{tpu_custom_call.1} parent=1 // pred_region
      %51 = dma.done [#allocation5], 16
    $region29: #{tpu_custom_call.1} parent=1 // pred_fallthru
      _
    // Predicated region
    $region30: #{tpu_custom_call.1} parent=1 // pred_check
      _
    $region31: #{tpu_custom_call.1} parent=1 // pred_check_branch
      %53 = sbr.rel (0) target = $region33
    $region32: #{tpu_custom_call.1} parent=1 // pred_region
      %54 = dma.done [#allocation5], 16
    $region33: #{tpu_custom_call.1} parent=1 // pred_fallthru
      _
    %55 = sfence
    %v56 = vld [vmem:[%s0] sm:$0xff]
    %v57 = vld [vmem:[%s0 + $0x8] sm:$0xff]
    %v58 = vld [vmem:[%s0 + $0x10] sm:$0xff]
    %v59 = vld [vmem:[%s0 + $0x18] sm:$0xff]
    %v60 = vld [vmem:[%s1] sm:$0xff]
    %v61 = vld [vmem:[%s1 + $0x8] sm:$0xff]
    %v62 = vld [vmem:[%s1 + $0x10] sm:$0xff]
    %v63 = vld [vmem:[%s1 + $0x18] sm:$0xff]
    %v64 = vld [vmem:[%s1 + $0x20] sm:$0xff]
    %v65 = vld [vmem:[%s1 + $0x28] sm:$0xff]
    %v66 = vld [vmem:[%s1 + $0x30] sm:$0xff]
    %v67 = vld [vmem:[%s1 + $0x38] sm:$0xff]
    %v68 = vld [vmem:[%s1 + $0x40] sm:$0xff]
    %v69 = vld [vmem:[%s1 + $0x48] sm:$0xff]
    %v70 = vld [vmem:[%s1 + $0x50] sm:$0xff]
    %v71 = vld [vmem:[%s1 + $0x58] sm:$0xff]
    %v72 = vld [vmem:[%s1 + $0x60] sm:$0xff]
    %v73 = vld [vmem:[%s1 + $0x68] sm:$0xff]
    %v74 = vld [vmem:[%s1 + $0x70] sm:$0xff]
    %v75 = vld [vmem:[%s1 + $0x78] sm:$0xff]
    %v76 = vld [vmem:[%s1 + $0x80] sm:$0xff]
    %v77 = vld [vmem:[%s1 + $0x88] sm:$0xff]
    %v78 = vld [vmem:[%s1 + $0x90] sm:$0xff]
    %v79 = vld [vmem:[%s1 + $0x98] sm:$0xff]
    %v80 = vld [vmem:[%s1 + $0xa0] sm:$0xff]
    %v81 = vld [vmem:[%s1 + $0xa8] sm:$0xff]
    %v82 = vld [vmem:[%s1 + $0xb0] sm:$0xff]
    %v83 = vld [vmem:[%s1 + $0xb8] sm:$0xff]
    %v84 = vld [vmem:[%s1 + $0xc0] sm:$0xff]
    %v85 = vld [vmem:[%s1 + $0xc8] sm:$0xff]
    %v86 = vld [vmem:[%s1 + $0xd0] sm:$0xff]
    %v87 = vld [vmem:[%s1 + $0xd8] sm:$0xff]
    %v88 = vld [vmem:[%s1 + $0xe0] sm:$0xff]
    %v89 = vld [vmem:[%s1 + $0xe8] sm:$0xff]
    %v90 = vld [vmem:[%s1 + $0xf0] sm:$0xff]
    %v91 = vld [vmem:[%s1 + $0xf8] sm:$0xff]
    %v92 = vld [vmem:[%s1 + $0x100] sm:$0xff]
    %v93 = vld [vmem:[%s1 + $0x108] sm:$0xff]
    %v94 = vld [vmem:[%s1 + $0x110] sm:$0xff]
    %v95 = vld [vmem:[%s1 + $0x118] sm:$0xff]
    %v96 = vld [vmem:[%s1 + $0x120] sm:$0xff]
    %v97 = vld [vmem:[%s1 + $0x128] sm:$0xff]
    %v98 = vld [vmem:[%s1 + $0x130] sm:$0xff]
    %v99 = vld [vmem:[%s1 + $0x138] sm:$0xff]
    %v100 = vld [vmem:[%s1 + $0x140] sm:$0xff]
    %v101 = vld [vmem:[%s1 + $0x148] sm:$0xff]
    %v102 = vld [vmem:[%s1 + $0x150] sm:$0xff]
    %v103 = vld [vmem:[%s1 + $0x158] sm:$0xff]
    %v104 = vld [vmem:[%s1 + $0x160] sm:$0xff]
    %v105 = vld [vmem:[%s1 + $0x168] sm:$0xff]
    %v106 = vld [vmem:[%s1 + $0x170] sm:$0xff]
    %v107 = vld [vmem:[%s1 + $0x178] sm:$0xff]
    %v108 = vld [vmem:[%s1 + $0x180] sm:$0xff]
    %v109 = vld [vmem:[%s1 + $0x188] sm:$0xff]
    %vm110 = vcmask 130048
    %v112 = vsel %vm110, %v59, 0
    %114 = vmatprep.subr.mxu0 0.0
    %115 = vmatpush1.msra.mxu0 %v75
    %116 = vmatprep.subr.mxu0 0.0
    %117 = vmatpush1.msra.mxu0 %v74
    %118 = vmatprep.subr.mxu0 0.0
    %119 = vmatpush1.msra.mxu0 %v73
    %120 = vmatprep.subr.mxu0 0.0
    %121 = vmatpush1.msra.mxu0 %v72
    %122 = vmatprep.subr.mxu0 0.0
    %123 = vmatpush1.msra.mxu0 %v71
    %124 = vmatprep.subr.mxu0 0.0
    %125 = vmatpush1.msra.mxu0 %v70
    %126 = vmatprep.subr.mxu0 0.0
    %127 = vmatpush1.msra.mxu0 %v69
    %128 = vmatprep.subr.mxu0 0.0
    %129 = vmatpush1.msra.mxu0 %v68
    %130 = vmatprep.subr.mxu0 0.0
    %131 = vmatpush1.msra.mxu0 %v67
    %132 = vmatprep.subr.mxu0 0.0
    %133 = vmatpush1.msra.mxu0 %v66
    %134 = vmatprep.subr.mxu0 0.0
    %135 = vmatpush1.msra.mxu0 %v65
    %136 = vmatprep.subr.mxu0 0.0
    %137 = vmatpush1.msra.mxu0 %v64
    %138 = vmatprep.subr.mxu0 0.0
    %139 = vmatpush1.msra.mxu0 %v63
    %140 = vmatprep.subr.mxu0 0.0
    %141 = vmatpush1.msra.mxu0 %v62
    %142 = vmatprep.subr.mxu0 0.0
    %143 = vmatpush1.msra.mxu0 %v61
    %144 = vmatprep.subr.mxu0 0.0
    %145 = vmatpush1.msra.mxu0 %v60
    %146 = vmatprep.subr.mxu0 0.0
    %147 = vmatpush2.msra.mxu0 %v91
    %148 = vmatprep.subr.mxu0 0.0
    %149 = vmatpush2.msra.mxu0 %v90
    %150 = vmatprep.subr.mxu0 0.0
    %151 = vmatpush2.msra.mxu0 %v89
    %152 = vmatprep.subr.mxu0 0.0
    %153 = vmatpush2.msra.mxu0 %v88
    %154 = vmatprep.subr.mxu0 0.0
    %155 = vmatpush2.msra.mxu0 %v87
    %156 = vmatprep.subr.mxu0 0.0
    %157 = vmatpush2.msra.mxu0 %v86
    %158 = vmatprep.subr.mxu0 0.0
    %159 = vmatpush2.msra.mxu0 %v85
    %160 = vmatprep.subr.mxu0 0.0
    %161 = vmatpush2.msra.mxu0 %v84
    %162 = vmatprep.subr.mxu0 0.0
    %163 = vmatpush2.msra.mxu0 %v83
    %164 = vmatprep.subr.mxu0 0.0
    %165 = vmatpush2.msra.mxu0 %v82
    %166 = vmatprep.subr.mxu0 0.0
    %167 = vmatpush2.msra.mxu0 %v81
    %168 = vmatprep.subr.mxu0 0.0
    %169 = vmatpush2.msra.mxu0 %v80
    %170 = vmatprep.subr.mxu0 0.0
    %171 = vmatpush2.msra.mxu0 %v79
    %172 = vmatprep.subr.mxu0 0.0
    %173 = vmatpush2.msra.mxu0 %v78
    %174 = vmatprep.subr.mxu0 0.0
    %175 = vmatpush2.msra.mxu0 %v77
    %176 = vmatprep.subr.mxu0 0.0
    %177 = vmatpush2.msra.mxu0 %v76
    %178 = vmatprep.mubr.f32.mxu0 %v57
    %179 = vmatmul.mubr.f32.gmra.mxu0 %v56
    %v180 = vpop.f32.mrf.mxu0
    %v181 = vadd.f32 0.0, %v180
    %v182 = vpop.f32.mrf.mxu0
    %183 = vdwg.mxu0
    %184 = vmatprep.subr.mxu0 0.0
    %185 = vmatpush1.msra.mxu0 %v107
    %186 = vmatprep.subr.mxu0 0.0
    %187 = vmatpush1.msra.mxu0 %v106
    %188 = vmatprep.subr.mxu0 0.0
    %189 = vmatpush1.msra.mxu0 %v105
    %190 = vmatprep.subr.mxu0 0.0
    %191 = vmatpush1.msra.mxu0 %v104
    %192 = vmatprep.subr.mxu0 0.0
    %193 = vmatpush1.msra.mxu0 %v103
    %194 = vmatprep.subr.mxu0 0.0
    %195 = vmatpush1.msra.mxu0 %v102
    %196 = vmatprep.subr.mxu0 0.0
    %197 = vmatpush1.msra.mxu0 %v101
    %198 = vmatprep.subr.mxu0 0.0
    %199 = vmatpush1.msra.mxu0 %v100
    %200 = vmatprep.subr.mxu0 0.0
    %201 = vmatpush1.msra.mxu0 %v99
    %202 = vmatprep.subr.mxu0 0.0
    %203 = vmatpush1.msra.mxu0 %v98
    %204 = vmatprep.subr.mxu0 0.0
    %205 = vmatpush1.msra.mxu0 %v97
    %206 = vmatprep.subr.mxu0 0.0
    %207 = vmatpush1.msra.mxu0 %v96
    %208 = vmatprep.subr.mxu0 0.0
    %209 = vmatpush1.msra.mxu0 %v95
    %210 = vmatprep.subr.mxu0 0.0
    %211 = vmatpush1.msra.mxu0 %v94
    %212 = vmatprep.subr.mxu0 0.0
    %213 = vmatpush1.msra.mxu0 %v93
    %214 = vmatprep.subr.mxu0 0.0
    %215 = vmatpush1.msra.mxu0 %v92
    %216 = vmatprep.subr.mxu0 0.0
    %217 = vmatpush2.msra.mxu0 0.0
    %218 = vmatprep.subr.mxu0 0.0
    %219 = vmatpush2.msra.mxu0 0.0
    %220 = vmatprep.subr.mxu0 0.0
    %221 = vmatpush2.msra.mxu0 0.0
    %222 = vmatprep.subr.mxu0 0.0
    %223 = vmatpush2.msra.mxu0 0.0
    %224 = vmatprep.subr.mxu0 0.0
    %225 = vmatpush2.msra.mxu0 0.0
    %226 = vmatprep.subr.mxu0 0.0
    %227 = vmatpush2.msra.mxu0 0.0
    %228 = vmatprep.subr.mxu0 0.0
    %229 = vmatpush2.msra.mxu0 0.0
    %230 = vmatprep.subr.mxu0 0.0
    %231 = vmatpush2.msra.mxu0 0.0
    %232 = vmatprep.subr.mxu0 0.0
    %233 = vmatpush2.msra.mxu0 0.0
    %234 = vmatprep.subr.mxu0 0.0
    %235 = vmatpush2.msra.mxu0 0.0
    %236 = vmatprep.subr.mxu0 0.0
    %237 = vmatpush2.msra.mxu0 0.0
    %238 = vmatprep.subr.mxu0 0.0
    %239 = vmatpush2.msra.mxu0 0.0
    %240 = vmatprep.subr.mxu0 0.0
    %241 = vmatpush2.msra.mxu0 0.0
    %242 = vmatprep.subr.mxu0 0.0
    %243 = vmatpush2.msra.mxu0 0.0
    %244 = vmatprep.subr.mxu0 0.0
    %245 = vmatpush2.msra.mxu0 %v109
    %246 = vmatprep.subr.mxu0 0.0
    %247 = vmatpush2.msra.mxu0 %v108
    %248 = vmatprep.mubr.f32.mxu0 %v112
    %249 = vmatmul.mubr.f32.gmra.mxu0 %v58
    %v250 = vpop.f32.mrf.mxu0
    %v251 = vadd.f32 %v181, %v250
    %v252 = vpop.f32.mrf.mxu0
    %253 = vdwg.mxu0
    %s254 = sld [smem:[#allocation2]]
    %v255 = vstv %s254
    %v256 = vadd.f32 %v251, %v255
    %v257 = vmax.f32 %v256, 0.0
    %s258 = sld [smem:[#allocation2 + $0x1]]
    %v259 = vstv %s258
    %v260 = vadd.f32 %v251, %v259
    %v261 = vmax.f32 %v260, 0.0
    %s262 = sld [smem:[#allocation4]]
    %v263 = vstv %s262
    %v264 = vmul.f32 %v257, %v263
    %s265 = sld [smem:[#allocation4 + $0x2]]
    %v266 = vstv %s265
    %v267 = vmul.f32 %v261, %v266
    %269 = vrot.lane.b32.xlu0 %v267, 127
    %v270 = vpop.permute.xlu0 %269
    %v272 = vadd.f32 %v264, %v270
    %s273 = sld [smem:[#allocation6]]
    %v274 = vstv %s273
    %v275 = vadd.f32 %v272, %v274
    %s276 = sld [smem:[#allocation4 + $0x1]]
    %v277 = vstv %s276
    %v278 = vmul.f32 %v257, %v277
    %s279 = sld [smem:[#allocation4 + $0x3]]
    %v280 = vstv %s279
    %v281 = vmul.f32 %v261, %v280
    %283 = vrot.lane.b32.xlu0 %v281, 127
    %v284 = vpop.permute.xlu0 %283
    %v286 = vadd.f32 %v278, %v284
    %s287 = sld [smem:[#allocation6 + $0x1]]
    %v288 = vstv %s287
    %v289 = vadd.f32 %v286, %v288
    %vm290 = vcmask 7168
    %291 = vst.msk [vmem:[%s5] sm:$0xff] %vm290, %v275
    %293 = vrot.lane.b32.xlu0 %v289, 1
    %v294 = vpop.permute.xlu0 %293
    %vm296 = vcmask 15368
    %297 = vst.msk [vmem:[%s5] sm:$0xff] %vm296, %v294
    // Predicated region
    $region34: #{tpu_custom_call.1} parent=1 // pred_check
      _
    $region35: #{tpu_custom_call.1} parent=1 // pred_check_branch
      %299 = sbr.rel (0) target = $region37
    $region36: #{tpu_custom_call.1} parent=1 // pred_region
      _
    $region37: #{tpu_custom_call.1} parent=1 // pred_fallthru
      _
    // Predicated region
    $region38: #{tpu_custom_call.1} parent=1 // pred_check
      _
    $region39: #{tpu_custom_call.1} parent=1 // pred_check_branch
      %301 = sbr.rel (0) target = $region41
    $region40: #{tpu_custom_call.1} parent=1 // pred_region
      _
    $region41: #{tpu_custom_call.1} parent=1 // pred_fallthru
      _
    %302 = vsyncpa [#allocation3], 1
    %303 = vsyncpa [#allocation5], 1

</llo_original>
